<compile_context>
chip_gen: v6e
topology: v6e:2x2x1
jax: 0.10.0
libtpu: 0.0.40
codegen_flags: <defaults>
</compile_context>

<pallas_src>
import functools

import numpy as np
import jax
import jax.numpy as jnp
from jax import lax
from jax.experimental import pallas as pl
from jax.experimental.pallas import tpu as pltpu


# ----------------------------------------------------------------------------
# Fused kernel: in-kernel 3x3 taps + conv matmuls + bias + GroupNorm + ReLU.
# ----------------------------------------------------------------------------
def _encoder_conv_kernel(x_ref, w_ref, mask_ref, const_ref, o_ref, *,
                         groups, eps, width):
    # x_ref     : (NB, Cin, HW)      f32   input samples for this block
    # w_ref     : (9, Cout, Cin)     bf16  conv weights, tap-major
    # mask_ref  : (9, 1, HW)         f32   0/1 edge-validity mask per tap
    # const_ref : (Cout, Cout+3)     f32   [group-membership | b | gamma | beta]
    # o_ref     : (NB, Cout, HW)     f32
    nb, cin, hw = x_ref.shape
    cout = o_ref.shape[1]
    cpg = cout // groups
    inv_n = 1.0 / float(cpg * hw)

    consts = const_ref[...]
    gmat = consts[:, :cout]                  # (Cout, Cout) group membership
    bias = consts[:, cout:cout + 1]          # (Cout, 1)
    gamma = consts[:, cout + 1:cout + 2]     # (Cout, 1)
    beta = consts[:, cout + 2:cout + 3]      # (Cout, 1)

    x = x_ref[...]                           # (NB, Cin, HW) f32

    # ---- 3x3 "same" conv: nine rolled+masked taps, nine small MXU matmuls ---
    acc = [jnp.zeros((cout, hw), jnp.float32) for _ in range(nb)]
    for t in range(9):
        di, dj = t // 3 - 1, t % 3 - 1
        shift = (-(di * width + dj)) % hw    # shifted[p] = x[p + di*W + dj]
        tap = x if shift == 0 else pltpu.roll(x, shift=shift, axis=2)
        if (di, dj) != (0, 0):
            tap = tap * mask_ref[t]          # zero padded / roll-wrapped lanes
        tap = tap.astype(jnp.bfloat16)       # bf16 operands, f32 accumulation
        w_t = w_ref[t]                       # (Cout, Cin) bf16
        for n in range(nb):
            acc[n] = acc[n] + jnp.dot(w_t, tap[n],
                                      preferred_element_type=jnp.float32)

    # ---- fused bias + GroupNorm + affine + ReLU epilogue (per sample) -------
    for n in range(nb):
        y = acc[n] + bias                                    # (Cout, HW)
        sum_c = jnp.sum(y, axis=1, keepdims=True)            # (Cout, 1)
        sumsq_c = jnp.sum(y * y, axis=1, keepdims=True)      # (Cout, 1)
        stats = jnp.concatenate([sum_c, sumsq_c], axis=1)    # (Cout, 2)
        gstats = jnp.dot(gmat, stats,
                         preferred_element_type=jnp.float32) * inv_n
        mean = gstats[:, 0:1]                                # per-group mean
        var = jnp.maximum(gstats[:, 1:2] - mean * mean, 0.0)
        scale = lax.rsqrt(var + eps) * gamma                 # (Cout, 1)
        offs = beta - mean * scale                           # (Cout, 1)
        o_ref[n] = jnp.maximum(y * scale + offs, 0.0).astype(o_ref.dtype)


# ----------------------------------------------------------------------------
# Host-side wrapper
# ----------------------------------------------------------------------------
def _pick_samples_per_block(n, max_nb=8):
    """Largest divisor of n that keeps >= 2 grid steps (v7x megacore) and is
    <= max_nb, amortizing per-grid-step overhead."""
    best = 1
    for nb in range(1, min(n // 2, max_nb) + 1):
        if n % nb == 0:
            best = nb
    return best


def encoder_conv_forward(x, w, b, gamma, beta, *, groups, eps=1e-5,
                         samples_per_block=None):
    """EncoderConv forward: relu(groupnorm(conv2d_3x3_pad1(x, w, b)))."""
    n, cin, h, width = x.shape
    cout = w.shape[0]
    assert cout % groups == 0, "GroupNorm groups must divide out_channels"
    hw = h * width
    assert hw % 128 == 0, "H*W must be a multiple of 128 for lane-dense tiles"
    nb = samples_per_block if samples_per_block is not None else \
        _pick_samples_per_block(n)
    assert n % nb == 0

    # Input goes straight to the kernel: free reshape, no cast pass, no im2col.
    x2 = x.reshape(n, cin, hw).astype(jnp.float32)

    # Conv weights, tap-major (9, Cout, Cin) so the kernel indexes the leading
    # axis with a static tap id.
    w_taps = jnp.transpose(w.astype(jnp.float32),
                           (2, 3, 0, 1)).reshape(9, cout, cin)
    w_taps = w_taps.astype(jnp.bfloat16)

    # Precomputed 0/1 edge-validity masks per tap (zero padded/wrapped lanes).
    ri, ci = np.divmod(np.arange(hw), width)
    mask_np = np.zeros((9, 1, hw), np.float32)
    for t in range(9):
        di, dj = t // 3 - 1, t % 3 - 1
        mask_np[t, 0] = ((ri + di >= 0) & (ri + di < h) &
                         (ci + dj >= 0) & (ci + dj < width))
    masks = jnp.asarray(mask_np, dtype=jnp.float32)

    # All per-channel constants packed into a single tile:
    # [group-membership matrix | conv bias | gamma | beta]  -> (Cout, Cout+3).
    cpg = cout // groups
    gmat_np = (np.arange(cout)[:, None] // cpg ==
               np.arange(cout)[None, :] // cpg).astype(np.float32)
    consts = jnp.concatenate(
        [jnp.asarray(gmat_np),
         b.reshape(cout, 1).astype(jnp.float32),
         gamma.reshape(cout, 1).astype(jnp.float32),
         beta.reshape(cout, 1).astype(jnp.float32)], axis=1)

    out = pl.pallas_call(
        functools.partial(_encoder_conv_kernel, groups=groups, eps=eps,
                          width=width),
        out_shape=jax.ShapeDtypeStruct((n, cout, hw), jnp.float32),
        grid_spec=pltpu.PrefetchScalarGridSpec(
            num_scalar_prefetch=0,
            grid=(n // nb,),
            in_specs=[
                pl.BlockSpec((nb, cin, hw), lambda i: (i, 0, 0)),
                pl.BlockSpec((9, cout, cin), lambda i: (0, 0, 0)),
                pl.BlockSpec((9, 1, hw), lambda i: (0, 0, 0)),
                pl.BlockSpec((cout, cout + 3), lambda i: (0, 0)),
            ],
            out_specs=pl.BlockSpec((nb, cout, hw), lambda i: (i, 0, 0)),
        ),
        compiler_params=pltpu.CompilerParams(
            dimension_semantics=("parallel",)),
    )(x2, w_taps, masks, consts)

    return out.reshape(n, cout, h, width)      # already NCHW, no transpose


# ----------------------------------------------------------------------------
# Pure-JAX reference (correctness sanity check)
# ----------------------------------------------------------------------------
def _reference_forward(x, w, b, gamma, beta, groups, eps):
    y = lax.conv_general_dilated(
        x, w, window_strides=(1, 1), padding=((1, 1), (1, 1)),
        dimension_numbers=("NCHW", "OIHW", "NCHW"),
        precision=lax.Precision.HIGHEST)
    y = y + b[None, :, None, None]
    N, C, H, W = y.shape
    yg = y.reshape(N, groups, C // groups, H * W)
    mean = yg.mean(axis=(2, 3), keepdims=True)
    var = yg.var(axis=(2, 3), keepdims=True)
    yn = ((yg - mean) / jnp.sqrt(var + eps)).reshape(N, C, H, W)
    return jnp.maximum(
        yn * gamma[None, :, None, None] + beta[None, :, None, None], 0.0)


if __name__ == "__main__":
    key = jax.random.PRNGKey(0)
    kx, kw, kb, kg, kbe = jax.random.split(key, 5)

    N, Cin, H, W = 2, 4, 16, 16
    Cout = 8
    groups = Cout // 4            # GroupNorm(out_ch // 4, out_ch)

    x = jax.random.normal(kx, (N, Cin, H, W), jnp.float32)
    s = 1.0 / np.sqrt(Cin * 9)
    w = jax.random.uniform(kw, (Cout, Cin, 3, 3), jnp.float32, -s, s)
    b = jax.random.uniform(kb, (Cout,), jnp.float32, -s, s)
    gamma = 1.0 + 0.1 * jax.random.normal(kg, (Cout,), jnp.float32)
    beta = 0.05 * jax.random.normal(kbe, (Cout,), jnp.float32)

    # The kernel quantizes conv operands to bf16 (f32 MXU accumulation).
    # Pre-quantize once so kernel and f32 reference see identical operands;
    # remaining differences are accumulation-order only.
    xq = x.astype(jnp.bfloat16).astype(jnp.float32)
    wq = w.astype(jnp.bfloat16).astype(jnp.float32)

    fwd = jax.jit(functools.partial(encoder_conv_forward, groups=groups))
    out = jax.block_until_ready(fwd(xq, wq, b, gamma, beta))

    ref = _reference_forward(xq, wq, b, gamma, beta, groups, 1e-5)
    np.testing.assert_allclose(np.asarray(out), np.asarray(ref),
                               atol=2e-3, rtol=2e-3)

    assert out.shape == (N, Cout, H, W), out.shape
    assert bool(jnp.all(jnp.isfinite(out)))
    assert bool(jnp.all(out >= 0.0))      # final ReLU
    print("KERNEL_OK")
</pallas_src>

<mosaic_0001>
module attributes {stable_mosaic.version = 11 : i64} {
  func.func @_encoder_conv_kernel(%arg0: i32, %arg1: memref<1x4x256xf32, #tpu.memory_space<vmem>>, %arg2: memref<9x8x4xbf16, #tpu.memory_space<vmem>>, %arg3: memref<9x1x256xf32, #tpu.memory_space<vmem>>, %arg4: memref<8x11xf32, #tpu.memory_space<vmem>>, %arg5: memref<1x8x256xf32, #tpu.memory_space<vmem>>) attributes {dimension_semantics = [#tpu.dimension_semantics<parallel>], iteration_bounds = array<i64: 2>, scalar_prefetch = 0 : i64, scratch_operands = 0 : i64, tpu.core_type = #tpu.core_type<tc>, window_params = [{transform_indices = @transform_0, window_bounds = array<i64: 1, 4, 256>}, {pipeline_mode = #tpu.pipeline_mode<synchronous>, transform_indices = @transform_1, window_bounds = array<i64: 9, 8, 4>}, {pipeline_mode = #tpu.pipeline_mode<synchronous>, transform_indices = @transform_2, window_bounds = array<i64: 9, 1, 256>}, {pipeline_mode = #tpu.pipeline_mode<synchronous>, transform_indices = @transform_3, window_bounds = array<i64: 8, 11>}, {transform_indices = @transform_4, window_bounds = array<i64: 1, 8, 256>}]} {
    %c0 = arith.constant 0 : index
    %c0_0 = arith.constant 0 : index
    %0 = vector.load %arg4[%c0, %c0_0] : memref<8x11xf32, #tpu.memory_space<vmem>>, vector<8x11xf32>
    %1 = vector.extract_strided_slice %0 {offsets = [0, 0], sizes = [8, 8], strides = [1, 1]} : vector<8x11xf32> to vector<8x8xf32>
    %2 = vector.extract_strided_slice %0 {offsets = [0, 8], sizes = [8, 1], strides = [1, 1]} : vector<8x11xf32> to vector<8x1xf32>
    %3 = vector.extract_strided_slice %0 {offsets = [0, 9], sizes = [8, 1], strides = [1, 1]} : vector<8x11xf32> to vector<8x1xf32>
    %4 = vector.extract_strided_slice %0 {offsets = [0, 10], sizes = [8, 1], strides = [1, 1]} : vector<8x11xf32> to vector<8x1xf32>
    %c0_1 = arith.constant 0 : index
    %c0_2 = arith.constant 0 : index
    %c0_3 = arith.constant 0 : index
    %5 = vector.load %arg1[%c0_1, %c0_2, %c0_3] : memref<1x4x256xf32, #tpu.memory_space<vmem>>, vector<1x4x256xf32>
    %cst = arith.constant 0.000000e+00 : f32
    %6 = vector.broadcast %cst : f32 to vector<8x256xf32>
    %c17_i32 = arith.constant 17 : i32
    %7 = tpu.dynamic_rotate %5 by %c17_i32 dim 2 : vector<1x4x256xf32>, i32 -> vector<1x4x256xf32>
    %c0_4 = arith.constant 0 : index
    %c0_5 = arith.constant 0 : index
    %c0_6 = arith.constant 0 : index
    %8 = vector.load %arg3[%c0_4, %c0_5, %c0_6] : memref<9x1x256xf32, #tpu.memory_space<vmem>>, vector<1x1x256xf32>
    %9 = vector.shape_cast %8 : vector<1x1x256xf32> to vector<1x256xf32>
    %10 = vector.shape_cast %9 : vector<1x256xf32> to vector<1x1x256xf32>
    %11 = vector.broadcast %10 : vector<1x1x256xf32> to vector<1x4x256xf32>
    %12 = arith.mulf %7, %11 : vector<1x4x256xf32>
    %13 = arith.truncf %12 : vector<1x4x256xf32> to vector<1x4x256xbf16>
    %c0_7 = arith.constant 0 : index
    %c0_8 = arith.constant 0 : index
    %c0_9 = arith.constant 0 : index
    %14 = vector.load %arg2[%c0_7, %c0_8, %c0_9] : memref<9x8x4xbf16, #tpu.memory_space<vmem>>, vector<1x8x4xbf16>
    %15 = vector.shape_cast %14 : vector<1x8x4xbf16> to vector<8x4xbf16>
    %16 = vector.shape_cast %13 : vector<1x4x256xbf16> to vector<4x256xbf16>
    %cst_10 = arith.constant dense<0.000000e+00> : vector<8x256xf32>
    %17 = tpu.matmul %15, %16, %cst_10 {dimension_numbers = #tpu.dot_dimension_numbers<[1], [0], [0], [1], [0, 0, 1, 1], [], []>} : vector<8x4xbf16>, vector<4x256xbf16>, vector<8x256xf32> -> vector<8x256xf32>
    %18 = arith.addf %6, %17 : vector<8x256xf32>
    %c16_i32 = arith.constant 16 : i32
    %19 = tpu.dynamic_rotate %5 by %c16_i32 dim 2 : vector<1x4x256xf32>, i32 -> vector<1x4x256xf32>
    %c1 = arith.constant 1 : index
    %c0_11 = arith.constant 0 : index
    %c0_12 = arith.constant 0 : index
    %20 = vector.load %arg3[%c1, %c0_11, %c0_12] : memref<9x1x256xf32, #tpu.memory_space<vmem>>, vector<1x1x256xf32>
    %21 = vector.shape_cast %20 : vector<1x1x256xf32> to vector<1x256xf32>
    %22 = vector.shape_cast %21 : vector<1x256xf32> to vector<1x1x256xf32>
    %23 = vector.broadcast %22 : vector<1x1x256xf32> to vector<1x4x256xf32>
    %24 = arith.mulf %19, %23 : vector<1x4x256xf32>
    %25 = arith.truncf %24 : vector<1x4x256xf32> to vector<1x4x256xbf16>
    %c1_13 = arith.constant 1 : index
    %c0_14 = arith.constant 0 : index
    %c0_15 = arith.constant 0 : index
    %26 = vector.load %arg2[%c1_13, %c0_14, %c0_15] : memref<9x8x4xbf16, #tpu.memory_space<vmem>>, vector<1x8x4xbf16>
    %27 = vector.shape_cast %26 : vector<1x8x4xbf16> to vector<8x4xbf16>
    %28 = vector.shape_cast %25 : vector<1x4x256xbf16> to vector<4x256xbf16>
    %cst_16 = arith.constant dense<0.000000e+00> : vector<8x256xf32>
    %29 = tpu.matmul %27, %28, %cst_16 {dimension_numbers = #tpu.dot_dimension_numbers<[1], [0], [0], [1], [0, 0, 1, 1], [], []>} : vector<8x4xbf16>, vector<4x256xbf16>, vector<8x256xf32> -> vector<8x256xf32>
    %30 = arith.addf %18, %29 : vector<8x256xf32>
    %c15_i32 = arith.constant 15 : i32
    %31 = tpu.dynamic_rotate %5 by %c15_i32 dim 2 : vector<1x4x256xf32>, i32 -> vector<1x4x256xf32>
    %c2 = arith.constant 2 : index
    %c0_17 = arith.constant 0 : index
    %c0_18 = arith.constant 0 : index
    %32 = vector.load %arg3[%c2, %c0_17, %c0_18] : memref<9x1x256xf32, #tpu.memory_space<vmem>>, vector<1x1x256xf32>
    %33 = vector.shape_cast %32 : vector<1x1x256xf32> to vector<1x256xf32>
    %34 = vector.shape_cast %33 : vector<1x256xf32> to vector<1x1x256xf32>
    %35 = vector.broadcast %34 : vector<1x1x256xf32> to vector<1x4x256xf32>
    %36 = arith.mulf %31, %35 : vector<1x4x256xf32>
    %37 = arith.truncf %36 : vector<1x4x256xf32> to vector<1x4x256xbf16>
    %c2_19 = arith.constant 2 : index
    %c0_20 = arith.constant 0 : index
    %c0_21 = arith.constant 0 : index
    %38 = vector.load %arg2[%c2_19, %c0_20, %c0_21] : memref<9x8x4xbf16, #tpu.memory_space<vmem>>, vector<1x8x4xbf16>
    %39 = vector.shape_cast %38 : vector<1x8x4xbf16> to vector<8x4xbf16>
    %40 = vector.shape_cast %37 : vector<1x4x256xbf16> to vector<4x256xbf16>
    %cst_22 = arith.constant dense<0.000000e+00> : vector<8x256xf32>
    %41 = tpu.matmul %39, %40, %cst_22 {dimension_numbers = #tpu.dot_dimension_numbers<[1], [0], [0], [1], [0, 0, 1, 1], [], []>} : vector<8x4xbf16>, vector<4x256xbf16>, vector<8x256xf32> -> vector<8x256xf32>
    %42 = arith.addf %30, %41 : vector<8x256xf32>
    %c1_i32 = arith.constant 1 : i32
    %43 = tpu.dynamic_rotate %5 by %c1_i32 dim 2 : vector<1x4x256xf32>, i32 -> vector<1x4x256xf32>
    %c3 = arith.constant 3 : index
    %c0_23 = arith.constant 0 : index
    %c0_24 = arith.constant 0 : index
    %44 = vector.load %arg3[%c3, %c0_23, %c0_24] : memref<9x1x256xf32, #tpu.memory_space<vmem>>, vector<1x1x256xf32>
    %45 = vector.shape_cast %44 : vector<1x1x256xf32> to vector<1x256xf32>
    %46 = vector.shape_cast %45 : vector<1x256xf32> to vector<1x1x256xf32>
    %47 = vector.broadcast %46 : vector<1x1x256xf32> to vector<1x4x256xf32>
    %48 = arith.mulf %43, %47 : vector<1x4x256xf32>
    %49 = arith.truncf %48 : vector<1x4x256xf32> to vector<1x4x256xbf16>
    %c3_25 = arith.constant 3 : index
    %c0_26 = arith.constant 0 : index
    %c0_27 = arith.constant 0 : index
    %50 = vector.load %arg2[%c3_25, %c0_26, %c0_27] : memref<9x8x4xbf16, #tpu.memory_space<vmem>>, vector<1x8x4xbf16>
    %51 = vector.shape_cast %50 : vector<1x8x4xbf16> to vector<8x4xbf16>
    %52 = vector.shape_cast %49 : vector<1x4x256xbf16> to vector<4x256xbf16>
    %cst_28 = arith.constant dense<0.000000e+00> : vector<8x256xf32>
    %53 = tpu.matmul %51, %52, %cst_28 {dimension_numbers = #tpu.dot_dimension_numbers<[1], [0], [0], [1], [0, 0, 1, 1], [], []>} : vector<8x4xbf16>, vector<4x256xbf16>, vector<8x256xf32> -> vector<8x256xf32>
    %54 = arith.addf %42, %53 : vector<8x256xf32>
    %55 = arith.truncf %5 : vector<1x4x256xf32> to vector<1x4x256xbf16>
    %c4 = arith.constant 4 : index
    %c0_29 = arith.constant 0 : index
    %c0_30 = arith.constant 0 : index
    %56 = vector.load %arg2[%c4, %c0_29, %c0_30] : memref<9x8x4xbf16, #tpu.memory_space<vmem>>, vector<1x8x4xbf16>
    %57 = vector.shape_cast %56 : vector<1x8x4xbf16> to vector<8x4xbf16>
    %58 = vector.shape_cast %55 : vector<1x4x256xbf16> to vector<4x256xbf16>
    %cst_31 = arith.constant dense<0.000000e+00> : vector<8x256xf32>
    %59 = tpu.matmul %57, %58, %cst_31 {dimension_numbers = #tpu.dot_dimension_numbers<[1], [0], [0], [1], [0, 0, 1, 1], [], []>} : vector<8x4xbf16>, vector<4x256xbf16>, vector<8x256xf32> -> vector<8x256xf32>
    %60 = arith.addf %54, %59 : vector<8x256xf32>
    %c255_i32 = arith.constant 255 : i32
    %61 = tpu.dynamic_rotate %5 by %c255_i32 dim 2 : vector<1x4x256xf32>, i32 -> vector<1x4x256xf32>
    %c5 = arith.constant 5 : index
    %c0_32 = arith.constant 0 : index
    %c0_33 = arith.constant 0 : index
    %62 = vector.load %arg3[%c5, %c0_32, %c0_33] : memref<9x1x256xf32, #tpu.memory_space<vmem>>, vector<1x1x256xf32>
    %63 = vector.shape_cast %62 : vector<1x1x256xf32> to vector<1x256xf32>
    %64 = vector.shape_cast %63 : vector<1x256xf32> to vector<1x1x256xf32>
    %65 = vector.broadcast %64 : vector<1x1x256xf32> to vector<1x4x256xf32>
    %66 = arith.mulf %61, %65 : vector<1x4x256xf32>
    %67 = arith.truncf %66 : vector<1x4x256xf32> to vector<1x4x256xbf16>
    %c5_34 = arith.constant 5 : index
    %c0_35 = arith.constant 0 : index
    %c0_36 = arith.constant 0 : index
    %68 = vector.load %arg2[%c5_34, %c0_35, %c0_36] : memref<9x8x4xbf16, #tpu.memory_space<vmem>>, vector<1x8x4xbf16>
    %69 = vector.shape_cast %68 : vector<1x8x4xbf16> to vector<8x4xbf16>
    %70 = vector.shape_cast %67 : vector<1x4x256xbf16> to vector<4x256xbf16>
    %cst_37 = arith.constant dense<0.000000e+00> : vector<8x256xf32>
    %71 = tpu.matmul %69, %70, %cst_37 {dimension_numbers = #tpu.dot_dimension_numbers<[1], [0], [0], [1], [0, 0, 1, 1], [], []>} : vector<8x4xbf16>, vector<4x256xbf16>, vector<8x256xf32> -> vector<8x256xf32>
    %72 = arith.addf %60, %71 : vector<8x256xf32>
    %c241_i32 = arith.constant 241 : i32
    %73 = tpu.dynamic_rotate %5 by %c241_i32 dim 2 : vector<1x4x256xf32>, i32 -> vector<1x4x256xf32>
    %c6 = arith.constant 6 : index
    %c0_38 = arith.constant 0 : index
    %c0_39 = arith.constant 0 : index
    %74 = vector.load %arg3[%c6, %c0_38, %c0_39] : memref<9x1x256xf32, #tpu.memory_space<vmem>>, vector<1x1x256xf32>
    %75 = vector.shape_cast %74 : vector<1x1x256xf32> to vector<1x256xf32>
    %76 = vector.shape_cast %75 : vector<1x256xf32> to vector<1x1x256xf32>
    %77 = vector.broadcast %76 : vector<1x1x256xf32> to vector<1x4x256xf32>
    %78 = arith.mulf %73, %77 : vector<1x4x256xf32>
    %79 = arith.truncf %78 : vector<1x4x256xf32> to vector<1x4x256xbf16>
    %c6_40 = arith.constant 6 : index
    %c0_41 = arith.constant 0 : index
    %c0_42 = arith.constant 0 : index
    %80 = vector.load %arg2[%c6_40, %c0_41, %c0_42] : memref<9x8x4xbf16, #tpu.memory_space<vmem>>, vector<1x8x4xbf16>
    %81 = vector.shape_cast %80 : vector<1x8x4xbf16> to vector<8x4xbf16>
    %82 = vector.shape_cast %79 : vector<1x4x256xbf16> to vector<4x256xbf16>
    %cst_43 = arith.constant dense<0.000000e+00> : vector<8x256xf32>
    %83 = tpu.matmul %81, %82, %cst_43 {dimension_numbers = #tpu.dot_dimension_numbers<[1], [0], [0], [1], [0, 0, 1, 1], [], []>} : vector<8x4xbf16>, vector<4x256xbf16>, vector<8x256xf32> -> vector<8x256xf32>
    %84 = arith.addf %72, %83 : vector<8x256xf32>
    %c240_i32 = arith.constant 240 : i32
    %85 = tpu.dynamic_rotate %5 by %c240_i32 dim 2 : vector<1x4x256xf32>, i32 -> vector<1x4x256xf32>
    %c7 = arith.constant 7 : index
    %c0_44 = arith.constant 0 : index
    %c0_45 = arith.constant 0 : index
    %86 = vector.load %arg3[%c7, %c0_44, %c0_45] : memref<9x1x256xf32, #tpu.memory_space<vmem>>, vector<1x1x256xf32>
    %87 = vector.shape_cast %86 : vector<1x1x256xf32> to vector<1x256xf32>
    %88 = vector.shape_cast %87 : vector<1x256xf32> to vector<1x1x256xf32>
    %89 = vector.broadcast %88 : vector<1x1x256xf32> to vector<1x4x256xf32>
    %90 = arith.mulf %85, %89 : vector<1x4x256xf32>
    %91 = arith.truncf %90 : vector<1x4x256xf32> to vector<1x4x256xbf16>
    %c7_46 = arith.constant 7 : index
    %c0_47 = arith.constant 0 : index
    %c0_48 = arith.constant 0 : index
    %92 = vector.load %arg2[%c7_46, %c0_47, %c0_48] : memref<9x8x4xbf16, #tpu.memory_space<vmem>>, vector<1x8x4xbf16>
    %93 = vector.shape_cast %92 : vector<1x8x4xbf16> to vector<8x4xbf16>
    %94 = vector.shape_cast %91 : vector<1x4x256xbf16> to vector<4x256xbf16>
    %cst_49 = arith.constant dense<0.000000e+00> : vector<8x256xf32>
    %95 = tpu.matmul %93, %94, %cst_49 {dimension_numbers = #tpu.dot_dimension_numbers<[1], [0], [0], [1], [0, 0, 1, 1], [], []>} : vector<8x4xbf16>, vector<4x256xbf16>, vector<8x256xf32> -> vector<8x256xf32>
    %96 = arith.addf %84, %95 : vector<8x256xf32>
    %c239_i32 = arith.constant 239 : i32
    %97 = tpu.dynamic_rotate %5 by %c239_i32 dim 2 : vector<1x4x256xf32>, i32 -> vector<1x4x256xf32>
    %c8 = arith.constant 8 : index
    %c0_50 = arith.constant 0 : index
    %c0_51 = arith.constant 0 : index
    %98 = vector.load %arg3[%c8, %c0_50, %c0_51] : memref<9x1x256xf32, #tpu.memory_space<vmem>>, vector<1x1x256xf32>
    %99 = vector.shape_cast %98 : vector<1x1x256xf32> to vector<1x256xf32>
    %100 = vector.shape_cast %99 : vector<1x256xf32> to vector<1x1x256xf32>
    %101 = vector.broadcast %100 : vector<1x1x256xf32> to vector<1x4x256xf32>
    %102 = arith.mulf %97, %101 : vector<1x4x256xf32>
    %103 = arith.truncf %102 : vector<1x4x256xf32> to vector<1x4x256xbf16>
    %c8_52 = arith.constant 8 : index
    %c0_53 = arith.constant 0 : index
    %c0_54 = arith.constant 0 : index
    %104 = vector.load %arg2[%c8_52, %c0_53, %c0_54] : memref<9x8x4xbf16, #tpu.memory_space<vmem>>, vector<1x8x4xbf16>
    %105 = vector.shape_cast %104 : vector<1x8x4xbf16> to vector<8x4xbf16>
    %106 = vector.shape_cast %103 : vector<1x4x256xbf16> to vector<4x256xbf16>
    %cst_55 = arith.constant dense<0.000000e+00> : vector<8x256xf32>
    %107 = tpu.matmul %105, %106, %cst_55 {dimension_numbers = #tpu.dot_dimension_numbers<[1], [0], [0], [1], [0, 0, 1, 1], [], []>} : vector<8x4xbf16>, vector<4x256xbf16>, vector<8x256xf32> -> vector<8x256xf32>
    %108 = arith.addf %96, %107 : vector<8x256xf32>
    %109 = vector.broadcast %2 : vector<8x1xf32> to vector<8x256xf32>
    %110 = arith.addf %108, %109 : vector<8x256xf32>
    %cst_56 = arith.constant dense<0.000000e+00> : vector<8xf32>
    %111 = vector.multi_reduction <add>, %110, %cst_56 [1] : vector<8x256xf32> to vector<8xf32>
    %112 = vector.shape_cast %111 : vector<8xf32> to vector<8x1xf32>
    %113 = arith.mulf %110, %110 : vector<8x256xf32>
    %cst_57 = arith.constant dense<0.000000e+00> : vector<8xf32>
    %114 = vector.multi_reduction <add>, %113, %cst_57 [1] : vector<8x256xf32> to vector<8xf32>
    %115 = vector.shape_cast %114 : vector<8xf32> to vector<8x1xf32>
    %116 = tpu.concatenate %112, %115 in 1 : vector<8x1xf32>, vector<8x1xf32> -> vector<8x2xf32>
    %cst_58 = arith.constant dense<0.000000e+00> : vector<8x2xf32>
    %117 = tpu.matmul %1, %116, %cst_58 {dimension_numbers = #tpu.dot_dimension_numbers<[1], [0], [0], [1], [0, 0, 1, 1], [], []>} : vector<8x8xf32>, vector<8x2xf32>, vector<8x2xf32> -> vector<8x2xf32>
    %cst_59 = arith.constant 9.765625E-4 : f32
    %118 = vector.broadcast %cst_59 : f32 to vector<8x2xf32>
    %119 = arith.mulf %117, %118 : vector<8x2xf32>
    %120 = vector.extract_strided_slice %119 {offsets = [0, 0], sizes = [8, 1], strides = [1, 1]} : vector<8x2xf32> to vector<8x1xf32>
    %121 = vector.extract_strided_slice %119 {offsets = [0, 1], sizes = [8, 1], strides = [1, 1]} : vector<8x2xf32> to vector<8x1xf32>
    %122 = arith.mulf %120, %120 : vector<8x1xf32>
    %123 = arith.subf %121, %122 : vector<8x1xf32>
    %cst_60 = arith.constant 0.000000e+00 : f32
    %124 = vector.broadcast %cst_60 : f32 to vector<8x1xf32>
    %125 = arith.maximumf %123, %124 : vector<8x1xf32>
    %cst_61 = arith.constant 9.99999974E-6 : f32
    %126 = vector.broadcast %cst_61 : f32 to vector<8x1xf32>
    %127 = arith.addf %125, %126 : vector<8x1xf32>
    %128 = math.rsqrt %127 : vector<8x1xf32>
    %129 = arith.mulf %128, %3 : vector<8x1xf32>
    %130 = arith.mulf %120, %129 : vector<8x1xf32>
    %131 = arith.subf %4, %130 : vector<8x1xf32>
    %132 = vector.broadcast %129 : vector<8x1xf32> to vector<8x256xf32>
    %133 = arith.mulf %110, %132 : vector<8x256xf32>
    %134 = vector.broadcast %131 : vector<8x1xf32> to vector<8x256xf32>
    %135 = arith.addf %133, %134 : vector<8x256xf32>
    %cst_62 = arith.constant 0.000000e+00 : f32
    %136 = vector.broadcast %cst_62 : f32 to vector<8x256xf32>
    %137 = arith.maximumf %135, %136 : vector<8x256xf32>
    %c0_63 = arith.constant 0 : index
    %c0_64 = arith.constant 0 : index
    %c0_65 = arith.constant 0 : index
    %138 = vector.load %arg5[%c0_63, %c0_64, %c0_65] : memref<1x8x256xf32, #tpu.memory_space<vmem>>, vector<1x8x256xf32>
    %139 = vector.shape_cast %138 : vector<1x8x256xf32> to vector<8x256xf32>
    %140 = vector.shape_cast %137 : vector<8x256xf32> to vector<1x8x256xf32>
    tpu.vector_store %arg5[%c0_63, %c0_64, %c0_65], %140 {strides = array<i32>} : memref<1x8x256xf32, #tpu.memory_space<vmem>>, vector<1x8x256xf32>,
    return
  }
  func.func @transform_0(%arg0: i32) -> (i32, i32, i32) {
    %c0_i32 = arith.constant 0 : i32
    %c0_i32_0 = arith.constant 0 : i32
    %c0_i32_1 = arith.constant 0 : i32
    return %arg0, %c0_i32, %c0_i32_0 : i32, i32, i32
  }
  func.func @transform_1(%arg0: i32) -> (i32, i32, i32) {
    %c0_i32 = arith.constant 0 : i32
    %c0_i32_0 = arith.constant 0 : i32
    %c0_i32_1 = arith.constant 0 : i32
    %c0_i32_2 = arith.constant 0 : i32
    return %c0_i32, %c0_i32_0, %c0_i32_1 : i32, i32, i32
  }
  func.func @transform_2(%arg0: i32) -> (i32, i32, i32) {
    %c0_i32 = arith.constant 0 : i32
    %c0_i32_0 = arith.constant 0 : i32
    %c0_i32_1 = arith.constant 0 : i32
    %c0_i32_2 = arith.constant 0 : i32
    return %c0_i32, %c0_i32_0, %c0_i32_1 : i32, i32, i32
  }
  func.func @transform_3(%arg0: i32) -> (i32, i32) {
    %c0_i32 = arith.constant 0 : i32
    %c0_i32_0 = arith.constant 0 : i32
    %c0_i32_1 = arith.constant 0 : i32
    return %c0_i32, %c0_i32_0 : i32, i32
  }
  func.func @transform_4(%arg0: i32) -> (i32, i32, i32) {
    %c0_i32 = arith.constant 0 : i32
    %c0_i32_0 = arith.constant 0 : i32
    %c0_i32_1 = arith.constant 0 : i32
    return %arg0, %c0_i32, %c0_i32_0 : i32, i32, i32
  }
}

</mosaic_0001>

<llo_original>
// kernel: encoder_conv_forward.1
$region0: #{encoder_conv_forward.1}
  #allocation0 [shape = 'u32[]', space=smem, size = 0x4, offset = 0x4, fixed_abs, tag = 'smem constant byte address 0x4 - core index']
  #allocation1 [shape = 'u32[144,128]{1,0:T(1,128)}', space=vmem, size = 0x12000, scoped, tag = 'internal scratch']
  %s0 = inlined_call_operand.vmem [shape: f32[2,4,256], index: 0, kind: input, shape index: {}]
  %s1 = inlined_call_operand.vmem [shape: bf16[9,8,4], index: 1, kind: input, shape index: {}]
  %s2 = inlined_call_operand.vmem [shape: f32[9,1,256], index: 2, kind: input, shape index: {}]
  %s3 = inlined_call_operand.vmem [shape: f32[8,11], index: 3, kind: input, shape index: {}]
  %s4 = inlined_call_operand.vmem [shape: f32[2,8,256], index: 4, kind: output, shape index: {}]
  %s5 = sld [smem:[#allocation0]]
  $region49: #{encoder_conv_forward.1} parent=0
    _
  %s7 = ssub.s32 1, %s5
  %s8 = scalar_select 0, %s7, %s5
  loop: start=0, step=1, limit=4
  $region2: #{encoder_conv_forward.1} parent=0 // loop_pre_header
    _
  $region3: #{encoder_conv_forward.1} parent=0 // loop_header
    %s10 = sphi 0, %s14
    %p11 = scmp.ge.s32.totalorder %s10, 4
    %s20 = sphi 0, %s22
    %s23 = sphi 0, %s20
    %s24 = sphi 0, %s23
    %s40 = sphi 0, %s24
    %s44 = sphi 0, %s44
    %s46 = sphi 0, %s44
    %s47 = sphi 0, %s46
    %s61 = sphi 0, %s47
    %s65 = sphi 0, %s65
    %s67 = sphi 0, %s65
    %s68 = sphi 0, %s67
    %s82 = sphi 0, %s68
    %s86 = sphi 0, %s86
    %s88 = sphi 0, %s86
    %s89 = sphi 0, %s88
    %s103 = sphi 0, %s89
    %s109 = sphi 0, %s111
    %s112 = sphi 0, %s109
    %s113 = sphi 0, %s112
    %s129 = sphi 0, %s113
  $region4: #{encoder_conv_forward.1} parent=0 // loop_header_branch
    %13 = sbr.rel (%p11) target = $region8
  $region5: #{encoder_conv_forward.1} parent=0 // loop_body
    %s15 = ssub.s32 %s10, 1
    %s16 = ssub.s32 %s10, 2
    %s17 = sadd.s32 %s10, 1
    %s18 = ssub.s32 %s10, %s17
    %p19 = scmp.eq.s32.totalorder %s18, 0
    %s21 = sadd.s32 %s20, 1
    %s22 = scalar_select %p19, %s20, %s21
    %p25 = pneg %p19
    %p26 = scmp.eq.s32.totalorder %s10, 1
    %p27 = por %p25, %p26
    %p28 = scmp.ne.s32.totalorder %s20, %s23
    %p29 = scmp.eq.s32.totalorder %s10, 0
    %p30 = por %p28, %p29
    %p31 = scmp.ne.s32.totalorder %s20, %s23
    %p32 = scmp.eq.s32.totalorder %s15, 1
    %p33 = por %p31, %p32
    %p34 = scmp.ne.s32.totalorder %s23, %s24
    %p35 = scmp.eq.s32.totalorder %s15, 0
    %p36 = por %p34, %p35
    %p37 = scmp.ne.s32.totalorder %s23, %s24
    %p38 = scmp.eq.s32.totalorder %s16, 1
    %p39 = por %p37, %p38
    %p41 = scmp.ne.s32.totalorder %s24, %s40
    %p42 = scmp.eq.s32.totalorder %s16, 0
    %p43 = por %p41, %p42
    %s45 = sadd.s32 %s44, 1
    %p48 = scmp.eq.s32.totalorder %s10, 1
    %p49 = scmp.ne.s32.totalorder %s44, %s46
    %p50 = scmp.eq.s32.totalorder %s10, 0
    %p51 = por %p49, %p50
    %p52 = scmp.ne.s32.totalorder %s44, %s46
    %p53 = scmp.eq.s32.totalorder %s15, 1
    %p54 = por %p52, %p53
    %p55 = scmp.ne.s32.totalorder %s46, %s47
    %p56 = scmp.eq.s32.totalorder %s15, 0
    %p57 = por %p55, %p56
    %p58 = scmp.ne.s32.totalorder %s46, %s47
    %p59 = scmp.eq.s32.totalorder %s16, 1
    %p60 = por %p58, %p59
    %p62 = scmp.ne.s32.totalorder %s47, %s61
    %p63 = scmp.eq.s32.totalorder %s16, 0
    %p64 = por %p62, %p63
    %s66 = sadd.s32 %s65, 1
    %p69 = scmp.eq.s32.totalorder %s10, 1
    %p70 = scmp.ne.s32.totalorder %s65, %s67
    %p71 = scmp.eq.s32.totalorder %s10, 0
    %p72 = por %p70, %p71
    %p73 = scmp.ne.s32.totalorder %s65, %s67
    %p74 = scmp.eq.s32.totalorder %s15, 1
    %p75 = por %p73, %p74
    %p76 = scmp.ne.s32.totalorder %s67, %s68
    %p77 = scmp.eq.s32.totalorder %s15, 0
    %p78 = por %p76, %p77
    %p79 = scmp.ne.s32.totalorder %s67, %s68
    %p80 = scmp.eq.s32.totalorder %s16, 1
    %p81 = por %p79, %p80
    %p83 = scmp.ne.s32.totalorder %s68, %s82
    %p84 = scmp.eq.s32.totalorder %s16, 0
    %p85 = por %p83, %p84
    %s87 = sadd.s32 %s86, 1
    %p90 = scmp.eq.s32.totalorder %s10, 1
    %p91 = scmp.ne.s32.totalorder %s86, %s88
    %p92 = scmp.eq.s32.totalorder %s10, 0
    %p93 = por %p91, %p92
    %p94 = scmp.ne.s32.totalorder %s86, %s88
    %p95 = scmp.eq.s32.totalorder %s15, 1
    %p96 = por %p94, %p95
    %p97 = scmp.ne.s32.totalorder %s88, %s89
    %p98 = scmp.eq.s32.totalorder %s15, 0
    %p99 = por %p97, %p98
    %p100 = scmp.ne.s32.totalorder %s88, %s89
    %p101 = scmp.eq.s32.totalorder %s16, 1
    %p102 = por %p100, %p101
    %p104 = scmp.ne.s32.totalorder %s89, %s103
    %p105 = scmp.eq.s32.totalorder %s16, 0
    %p106 = por %p104, %p105
    %s107 = ssub.s32 %s10, %s17
    %p108 = scmp.eq.s32.totalorder %s107, 0
    %s110 = sadd.s32 %s109, 1
    %s111 = scalar_select %p108, %s109, %s110
    %p114 = pneg %p108
    %p115 = scmp.eq.s32.totalorder %s10, 1
    %p116 = por %p114, %p115
    %p117 = scmp.ne.s32.totalorder %s109, %s112
    %p118 = scmp.eq.s32.totalorder %s10, 0
    %p119 = por %p117, %p118
    %p120 = scmp.ne.s32.totalorder %s109, %s112
    %p121 = scmp.eq.s32.totalorder %s15, 1
    %p122 = por %p120, %p121
    %p123 = scmp.ne.s32.totalorder %s112, %s113
    %p124 = scmp.eq.s32.totalorder %s15, 0
    %p125 = por %p123, %p124
    %p126 = scmp.ne.s32.totalorder %s112, %s113
    %p127 = scmp.eq.s32.totalorder %s16, 1
    %p128 = por %p126, %p127
    %p130 = scmp.ne.s32.totalorder %s113, %s129
    %p131 = scmp.eq.s32.totalorder %s16, 0
    %p132 = por %p130, %p131
    %p133 = scmp.le.s32.totalorder 1, %s10
    %p134 = scmp.lt.s32.totalorder %s10, 3
    %p135 = pnand %p133, %p134
    %p136 = pneg %p135
    // Predicated region
    $region9: #{encoder_conv_forward.1} parent=5 // pred_check
      _
    $region10: #{encoder_conv_forward.1} parent=5 // pred_check_branch
      %138 = sbr.rel (%p135) target = $region12
    $region11: #{encoder_conv_forward.1} parent=5 // pred_region
      %s139 = ssub.s32 %s10, 1
      // Predicated region
      $region13: #{encoder_conv_forward.1} parent=11 // pred_check
        %p140 = pneg %p57
      $region14: #{encoder_conv_forward.1} parent=11 // pred_check_branch
        %142 = sbr.rel (%p140) target = $region16
      $region15: #{encoder_conv_forward.1} parent=11 // pred_region
        _
      $region16: #{encoder_conv_forward.1} parent=11 // pred_fallthru
        _
      // Predicated region
      $region17: #{encoder_conv_forward.1} parent=11 // pred_check
        %p143 = pneg %p78
      $region18: #{encoder_conv_forward.1} parent=11 // pred_check_branch
        %145 = sbr.rel (%p143) target = $region20
      $region19: #{encoder_conv_forward.1} parent=11 // pred_region
        _
      $region20: #{encoder_conv_forward.1} parent=11 // pred_fallthru
        _
      // Predicated region
      $region21: #{encoder_conv_forward.1} parent=11 // pred_check
        %p146 = pneg %p99
      $region22: #{encoder_conv_forward.1} parent=11 // pred_check_branch
        %148 = sbr.rel (%p146) target = $region24
      $region23: #{encoder_conv_forward.1} parent=11 // pred_region
        _
      $region24: #{encoder_conv_forward.1} parent=11 // pred_fallthru
        _
    $region12: #{encoder_conv_forward.1} parent=5 // pred_fallthru
      _
    %p149 = scmp.lt.s32.totalorder %s10, 2
    // Predicated region
    $region25: #{encoder_conv_forward.1} parent=5 // pred_check
      %p150 = pneg %p149
    $region26: #{encoder_conv_forward.1} parent=5 // pred_check_branch
      %152 = sbr.rel (%p150) target = $region28
    $region27: #{encoder_conv_forward.1} parent=5 // pred_region
      // Predicated region
      $region29: #{encoder_conv_forward.1} parent=27 // pred_check
        %p153 = pneg %p30
      $region30: #{encoder_conv_forward.1} parent=27 // pred_check_branch
        %155 = sbr.rel (%p153) target = $region32
      $region31: #{encoder_conv_forward.1} parent=27 // pred_region
        %p156 = scmp.lt.s32.totalorder %s10, 1
        %s157 = scalar_select %p156, %s10, 1
        %s158 = smul.addr %s157, 2
        %s159 = smul.addr %s158, 4
        %s160 = scalar_lea.vmem %s0, %s159
      $region32: #{encoder_conv_forward.1} parent=27 // pred_fallthru
        _
    $region28: #{encoder_conv_forward.1} parent=5 // pred_fallthru
      _
    %p161 = scmp.le.s32.totalorder 1, %s10
    %p162 = scmp.lt.s32.totalorder %s10, 3
    %p163 = pnand %p161, %p162
    %p164 = pneg %p163
    // Predicated region
    $region33: #{encoder_conv_forward.1} parent=5 // pred_check
      _
    $region34: #{encoder_conv_forward.1} parent=5 // pred_check_branch
      %166 = sbr.rel (%p163) target = $region36
    $region35: #{encoder_conv_forward.1} parent=5 // pred_region
      %s167 = ssub.s32 %s10, 1
      %p168 = scmp.lt.s32.totalorder %s15, 1
      %s169 = scalar_select %p168, %s15, 1
      %s170 = smul.addr %s169, 2
      %s171 = smul.addr %s170, 4
      %s172 = scalar_lea.vmem %s0, %s171
      %p173 = pneg %p36
      %p174 = pneg %p33
      %p175 = pneg %p57
      %p176 = pneg %p54
      %p177 = pneg %p78
      %p178 = pneg %p75
      %p179 = pneg %p99
      %p180 = pneg %p96
      %p181 = pneg %p125
      %p182 = pneg %p122
      %p183 = scmp.lt.s32.totalorder %s15, 1
      %s184 = scalar_select %p183, %s15, 1
      %s185 = smul.addr %s184, 2
      %s186 = smul.addr %s185, 8
      %s187 = scalar_lea.vmem %s4, %s186
      %p188 = scmp.lt.s32.totalorder %s15, 1
      %s189 = scalar_select %p188, %s15, 1
      %s190 = smul.addr %s189, 2
      %s191 = smul.addr %s190, 4
      %s192 = scalar_lea.vmem %s0, %s191
      %p193 = scmp.lt.s32.totalorder %s15, 1
      %s194 = scalar_select %p193, %s15, 1
      %s195 = smul.addr %s194, 2
      %s196 = smul.addr %s195, 8
      %s197 = scalar_lea.vmem %s4, %s196
      %v199 = vld [vmem:[%s3] sm:$0xff]
      %v200 = vld [vmem:[%s192] sm:$0xff]
      %v202 = vcombine.high %v200, %v200
      %204 = vrot.lane.b32.xlu0 %v200, 17
      %v205 = vpop.permute.xlu0 %204
      %206 = vrot.lane.b32.xlu0 %v202, 17
      %v207 = vpop.permute.xlu0 %206
      %v208 = vlaneseq
      %v209 = vand.u32 %v208, 127
      %vm210 = vcmp.lt.s32.totalorder %v209, 17
      %v211 = vsel %vm210, %v205, %v207
      %v212 = vsel %vm210, %v207, %v205
      %v213 = vld [vmem:[%s2] sm:$0x3]
      %v215 = vlaneseq
      %v216 = vshrl.u32 %v215, 7
      %v217 = vsub.s32 0, %v216
      %v218 = vrot.slane %v213, %v217
      %v219 = vlaneseq
      %v220 = vshrl.u32 %v219, 7
      %v221 = vsub.s32 1, %v220
      %v222 = vrot.slane %v213, %v221
      %v225 = vmul.f32 %v212, %v218
      %v226 = vmul.f32 %v211, %v222
      %v227 = vpack.c.bf16 %v225, %v225
      %v228 = vpack.c.bf16 %v226, %v226
      %v229 = vld [vmem:[%s1] sm:$0xf]
      %230 = vrot.lane.b32.xlu0 %v200, 16
      %v231 = vpop.permute.xlu0 %230
      %232 = vrot.lane.b32.xlu0 %v202, 16
      %v233 = vpop.permute.xlu0 %232
      %vm234 = vcmp.lt.s32.totalorder %v209, 16
      %v235 = vsel %vm234, %v231, %v233
      %v236 = vsel %vm234, %v233, %v231
      %s237 = scalar_lea.vmem %s2, 2
      %v238 = vld [vmem:[%s237] sm:$0x3]
      %v240 = vlaneseq
      %v241 = vshrl.u32 %v240, 7
      %v242 = vsub.s32 0, %v241
      %v243 = vrot.slane %v238, %v242
      %v244 = vlaneseq
      %v245 = vshrl.u32 %v244, 7
      %v246 = vsub.s32 1, %v245
      %v247 = vrot.slane %v238, %v246
      %v250 = vmul.f32 %v236, %v243
      %v251 = vmul.f32 %v235, %v247
      %v252 = vpack.c.bf16 %v250, %v250
      %v253 = vpack.c.bf16 %v251, %v251
      %s254 = scalar_lea.vmem %s1, 4
      %v255 = vld [vmem:[%s254] sm:$0xf]
      %vm256 = vcmask 31744
      %v258 = vsel %vm256, %v255, 0
      %vm260 = vcmask 1041408
      %v262 = vsel %vm260, %v252, 0
      %v265 = vsel %vm260, %v253, 0
      %267 = vmatprep.subr.bf16.mxu0 0
      %268 = vmatpush1.bf16.msra.mxu0 0
      %269 = vmatprep.subr.bf16.mxu0 0
      %270 = vmatpush1.bf16.msra.mxu0 0
      %271 = vmatprep.subr.bf16.mxu0 0
      %272 = vmatpush1.bf16.msra.mxu0 0
      %273 = vmatprep.subr.bf16.mxu0 0
      %274 = vmatpush1.bf16.msra.mxu0 0
      %275 = vmatprep.subr.bf16.mxu0 0
      %276 = vmatpush1.bf16.msra.mxu0 0
      %277 = vmatprep.subr.bf16.mxu0 0
      %278 = vmatpush1.bf16.msra.mxu0 0
      %279 = vmatprep.subr.bf16.mxu0 0
      %280 = vmatpush1.bf16.msra.mxu0 0
      %281 = vmatprep.subr.bf16.mxu0 %v265
      %282 = vmatpush1.bf16.msra.mxu0 %v262
      %283 = vmatprep.subr.bf16.mxu0 0
      %284 = vmatpush2.bf16.msra.mxu0 0
      %285 = vmatprep.subr.bf16.mxu0 0
      %286 = vmatpush2.bf16.msra.mxu0 0
      %287 = vmatprep.subr.bf16.mxu0 0
      %288 = vmatpush2.bf16.msra.mxu0 0
      %289 = vmatprep.subr.bf16.mxu0 0
      %290 = vmatpush2.bf16.msra.mxu0 0
      %291 = vmatprep.subr.bf16.mxu0 0
      %292 = vmatpush2.bf16.msra.mxu0 0
      %293 = vmatprep.subr.bf16.mxu0 0
      %294 = vmatpush2.bf16.msra.mxu0 0
      %295 = vmatprep.subr.bf16.mxu0 0
      %296 = vmatpush2.bf16.msra.mxu0 0
      %297 = vmatprep.subr.bf16.mxu0 0
      %298 = vmatpush2.bf16.msra.mxu0 0
      %299 = vmatprep.mubr.bf16.mxu0 0
      %300 = vmatmul.mubr.bf16.gmra.mxu0 %v258
      %v301 = vpop.f32.mrf.mxu0
      %v302 = vadd.f32 0.0, %v301
      %v303 = vpop.f32.mrf.mxu0
      %v304 = vadd.f32 0.0, %v303
      %v305 = vpop.f32.mrf.mxu0
      %v306 = vpop.f32.mrf.mxu0
      %307 = vdwg.mxu0
      %v309 = vsel %vm256, %v229, 0
      %v312 = vsel %vm260, %v227, 0
      %v315 = vsel %vm260, %v228, 0
      %317 = vmatprep.subr.bf16.mxu0 0
      %318 = vmatpush1.bf16.msra.mxu0 0
      %319 = vmatprep.subr.bf16.mxu0 0
      %320 = vmatpush1.bf16.msra.mxu0 0
      %321 = vmatprep.subr.bf16.mxu0 0
      %322 = vmatpush1.bf16.msra.mxu0 0
      %323 = vmatprep.subr.bf16.mxu0 0
      %324 = vmatpush1.bf16.msra.mxu0 0
      %325 = vmatprep.subr.bf16.mxu0 0
      %326 = vmatpush1.bf16.msra.mxu0 0
      %327 = vmatprep.subr.bf16.mxu0 0
      %328 = vmatpush1.bf16.msra.mxu0 0
      %329 = vmatprep.subr.bf16.mxu0 0
      %330 = vmatpush1.bf16.msra.mxu0 0
      %331 = vmatprep.subr.bf16.mxu0 %v315
      %332 = vmatpush1.bf16.msra.mxu0 %v312
      %333 = vmatprep.subr.bf16.mxu0 0
      %334 = vmatpush2.bf16.msra.mxu0 0
      %335 = vmatprep.subr.bf16.mxu0 0
      %336 = vmatpush2.bf16.msra.mxu0 0
      %337 = vmatprep.subr.bf16.mxu0 0
      %338 = vmatpush2.bf16.msra.mxu0 0
      %339 = vmatprep.subr.bf16.mxu0 0
      %340 = vmatpush2.bf16.msra.mxu0 0
      %341 = vmatprep.subr.bf16.mxu0 0
      %342 = vmatpush2.bf16.msra.mxu0 0
      %343 = vmatprep.subr.bf16.mxu0 0
      %344 = vmatpush2.bf16.msra.mxu0 0
      %345 = vmatprep.subr.bf16.mxu0 0
      %346 = vmatpush2.bf16.msra.mxu0 0
      %347 = vmatprep.subr.bf16.mxu0 0
      %348 = vmatpush2.bf16.msra.mxu0 0
      %349 = vmatprep.mubr.bf16.mxu0 0
      %350 = vmatmul.mubr.bf16.gmra.mxu0 %v309
      %v351 = vpop.f32.mrf.mxu0
      %v352 = vadd.f32 %v302, %v351
      %v353 = vpop.f32.mrf.mxu0
      %v354 = vadd.f32 %v304, %v353
      %v355 = vpop.f32.mrf.mxu0
      %v356 = vpop.f32.mrf.mxu0
      %357 = vdwg.mxu0
      %358 = vrot.lane.b32.xlu0 %v200, 15
      %v359 = vpop.permute.xlu0 %358
      %360 = vrot.lane.b32.xlu0 %v202, 15
      %v361 = vpop.permute.xlu0 %360
      %vm362 = vcmp.lt.s32.totalorder %v209, 15
      %v363 = vsel %vm362, %v359, %v361
      %v364 = vsel %vm362, %v361, %v359
      %s365 = scalar_lea.vmem %s2, 4
      %v366 = vld [vmem:[%s365] sm:$0x3]
      %v368 = vlaneseq
      %v369 = vshrl.u32 %v368, 7
      %v370 = vsub.s32 0, %v369
      %v371 = vrot.slane %v366, %v370
      %v372 = vlaneseq
      %v373 = vshrl.u32 %v372, 7
      %v374 = vsub.s32 1, %v373
      %v375 = vrot.slane %v366, %v374
      %v378 = vmul.f32 %v364, %v371
      %v379 = vmul.f32 %v363, %v375
      %v380 = vpack.c.bf16 %v378, %v378
      %v381 = vpack.c.bf16 %v379, %v379
      %s382 = scalar_lea.vmem %s1, 8
      %v383 = vld [vmem:[%s382] sm:$0xf]
      %v385 = vsel %vm256, %v383, 0
      %v388 = vsel %vm260, %v380, 0
      %v391 = vsel %vm260, %v381, 0
      %393 = vmatprep.subr.bf16.mxu0 0
      %394 = vmatpush1.bf16.msra.mxu0 0
      %395 = vmatprep.subr.bf16.mxu0 0
      %396 = vmatpush1.bf16.msra.mxu0 0
      %397 = vmatprep.subr.bf16.mxu0 0
      %398 = vmatpush1.bf16.msra.mxu0 0
      %399 = vmatprep.subr.bf16.mxu0 0
      %400 = vmatpush1.bf16.msra.mxu0 0
      %401 = vmatprep.subr.bf16.mxu0 0
      %402 = vmatpush1.bf16.msra.mxu0 0
      %403 = vmatprep.subr.bf16.mxu0 0
      %404 = vmatpush1.bf16.msra.mxu0 0
      %405 = vmatprep.subr.bf16.mxu0 0
      %406 = vmatpush1.bf16.msra.mxu0 0
      %407 = vmatprep.subr.bf16.mxu0 %v391
      %408 = vmatpush1.bf16.msra.mxu0 %v388
      %409 = vmatprep.subr.bf16.mxu0 0
      %410 = vmatpush2.bf16.msra.mxu0 0
      %411 = vmatprep.subr.bf16.mxu0 0
      %412 = vmatpush2.bf16.msra.mxu0 0
      %413 = vmatprep.subr.bf16.mxu0 0
      %414 = vmatpush2.bf16.msra.mxu0 0
      %415 = vmatprep.subr.bf16.mxu0 0
      %416 = vmatpush2.bf16.msra.mxu0 0
      %417 = vmatprep.subr.bf16.mxu0 0
      %418 = vmatpush2.bf16.msra.mxu0 0
      %419 = vmatprep.subr.bf16.mxu0 0
      %420 = vmatpush2.bf16.msra.mxu0 0
      %421 = vmatprep.subr.bf16.mxu0 0
      %422 = vmatpush2.bf16.msra.mxu0 0
      %423 = vmatprep.subr.bf16.mxu0 0
      %424 = vmatpush2.bf16.msra.mxu0 0
      %425 = vmatprep.mubr.bf16.mxu0 0
      %426 = vmatmul.mubr.bf16.gmra.mxu0 %v385
      %v427 = vpop.f32.mrf.mxu0
      %v428 = vadd.f32 0.0, %v427
      %v429 = vpop.f32.mrf.mxu0
      %v430 = vadd.f32 0.0, %v429
      %v431 = vpop.f32.mrf.mxu0
      %v432 = vpop.f32.mrf.mxu0
      %433 = vdwg.mxu0
      %v434 = vadd.f32 %v352, %v428
      %v435 = vadd.f32 %v354, %v430
      %436 = vrot.lane.b32.xlu0 %v200, 1
      %v437 = vpop.permute.xlu0 %436
      %438 = vrot.lane.b32.xlu0 %v202, 1
      %v439 = vpop.permute.xlu0 %438
      %vm440 = vcmp.lt.s32.totalorder %v209, 1
      %v441 = vsel %vm440, %v437, %v439
      %v442 = vsel %vm440, %v439, %v437
      %s443 = scalar_lea.vmem %s2, 6
      %v444 = vld [vmem:[%s443] sm:$0x3]
      %v446 = vlaneseq
      %v447 = vshrl.u32 %v446, 7
      %v448 = vsub.s32 0, %v447
      %v449 = vrot.slane %v444, %v448
      %v450 = vlaneseq
      %v451 = vshrl.u32 %v450, 7
      %v452 = vsub.s32 1, %v451
      %v453 = vrot.slane %v444, %v452
      %v456 = vmul.f32 %v442, %v449
      %v457 = vmul.f32 %v441, %v453
      %v458 = vpack.c.bf16 %v456, %v456
      %v459 = vpack.c.bf16 %v457, %v457
      %s460 = scalar_lea.vmem %s1, 12
      %v461 = vld [vmem:[%s460] sm:$0xf]
      %v463 = vsel %vm256, %v461, 0
      %v466 = vsel %vm260, %v458, 0
      %v469 = vsel %vm260, %v459, 0
      %471 = vmatprep.subr.bf16.mxu0 0
      %472 = vmatpush1.bf16.msra.mxu0 0
      %473 = vmatprep.subr.bf16.mxu0 0
      %474 = vmatpush1.bf16.msra.mxu0 0
      %475 = vmatprep.subr.bf16.mxu0 0
      %476 = vmatpush1.bf16.msra.mxu0 0
      %477 = vmatprep.subr.bf16.mxu0 0
      %478 = vmatpush1.bf16.msra.mxu0 0
      %479 = vmatprep.subr.bf16.mxu0 0
      %480 = vmatpush1.bf16.msra.mxu0 0
      %481 = vmatprep.subr.bf16.mxu0 0
      %482 = vmatpush1.bf16.msra.mxu0 0
      %483 = vmatprep.subr.bf16.mxu0 0
      %484 = vmatpush1.bf16.msra.mxu0 0
      %485 = vmatprep.subr.bf16.mxu0 %v469
      %486 = vmatpush1.bf16.msra.mxu0 %v466
      %487 = vmatprep.subr.bf16.mxu0 0
      %488 = vmatpush2.bf16.msra.mxu0 0
      %489 = vmatprep.subr.bf16.mxu0 0
      %490 = vmatpush2.bf16.msra.mxu0 0
      %491 = vmatprep.subr.bf16.mxu0 0
      %492 = vmatpush2.bf16.msra.mxu0 0
      %493 = vmatprep.subr.bf16.mxu0 0
      %494 = vmatpush2.bf16.msra.mxu0 0
      %495 = vmatprep.subr.bf16.mxu0 0
      %496 = vmatpush2.bf16.msra.mxu0 0
      %497 = vmatprep.subr.bf16.mxu0 0
      %498 = vmatpush2.bf16.msra.mxu0 0
      %499 = vmatprep.subr.bf16.mxu0 0
      %500 = vmatpush2.bf16.msra.mxu0 0
      %501 = vmatprep.subr.bf16.mxu0 0
      %502 = vmatpush2.bf16.msra.mxu0 0
      %503 = vmatprep.mubr.bf16.mxu0 0
      %504 = vmatmul.mubr.bf16.gmra.mxu0 %v463
      %v505 = vpop.f32.mrf.mxu0
      %v506 = vadd.f32 0.0, %v505
      %v507 = vpop.f32.mrf.mxu0
      %v508 = vadd.f32 0.0, %v507
      %v509 = vpop.f32.mrf.mxu0
      %v510 = vpop.f32.mrf.mxu0
      %511 = vdwg.mxu0
      %v512 = vadd.f32 %v434, %v506
      %v513 = vadd.f32 %v435, %v508
      %v514 = vpack.c.bf16 %v200, %v200
      %v515 = vpack.c.bf16 %v202, %v202
      %s516 = scalar_lea.vmem %s1, 16
      %v517 = vld [vmem:[%s516] sm:$0xf]
      %v519 = vsel %vm256, %v517, 0
      %v522 = vsel %vm260, %v514, 0
      %v525 = vsel %vm260, %v515, 0
      %527 = vmatprep.subr.bf16.mxu0 0
      %528 = vmatpush1.bf16.msra.mxu0 0
      %529 = vmatprep.subr.bf16.mxu0 0
      %530 = vmatpush1.bf16.msra.mxu0 0
      %531 = vmatprep.subr.bf16.mxu0 0
      %532 = vmatpush1.bf16.msra.mxu0 0
      %533 = vmatprep.subr.bf16.mxu0 0
      %534 = vmatpush1.bf16.msra.mxu0 0
      %535 = vmatprep.subr.bf16.mxu0 0
      %536 = vmatpush1.bf16.msra.mxu0 0
      %537 = vmatprep.subr.bf16.mxu0 0
      %538 = vmatpush1.bf16.msra.mxu0 0
      %539 = vmatprep.subr.bf16.mxu0 0
      %540 = vmatpush1.bf16.msra.mxu0 0
      %541 = vmatprep.subr.bf16.mxu0 %v525
      %542 = vmatpush1.bf16.msra.mxu0 %v522
      %543 = vmatprep.subr.bf16.mxu0 0
      %544 = vmatpush2.bf16.msra.mxu0 0
      %545 = vmatprep.subr.bf16.mxu0 0
      %546 = vmatpush2.bf16.msra.mxu0 0
      %547 = vmatprep.subr.bf16.mxu0 0
      %548 = vmatpush2.bf16.msra.mxu0 0
      %549 = vmatprep.subr.bf16.mxu0 0
      %550 = vmatpush2.bf16.msra.mxu0 0
      %551 = vmatprep.subr.bf16.mxu0 0
      %552 = vmatpush2.bf16.msra.mxu0 0
      %553 = vmatprep.subr.bf16.mxu0 0
      %554 = vmatpush2.bf16.msra.mxu0 0
      %555 = vmatprep.subr.bf16.mxu0 0
      %556 = vmatpush2.bf16.msra.mxu0 0
      %557 = vmatprep.subr.bf16.mxu0 0
      %558 = vmatpush2.bf16.msra.mxu0 0
      %559 = vmatprep.mubr.bf16.mxu0 0
      %560 = vmatmul.mubr.bf16.gmra.mxu0 %v519
      %v561 = vpop.f32.mrf.mxu0
      %v562 = vadd.f32 0.0, %v561
      %v563 = vpop.f32.mrf.mxu0
      %v564 = vadd.f32 0.0, %v563
      %v565 = vpop.f32.mrf.mxu0
      %v566 = vpop.f32.mrf.mxu0
      %567 = vdwg.mxu0
      %v568 = vadd.f32 %v512, %v562
      %v569 = vadd.f32 %v513, %v564
      %570 = vrot.lane.b32.xlu0 %v200, 127
      %v571 = vpop.permute.xlu0 %570
      %572 = vrot.lane.b32.xlu0 %v202, 127
      %v573 = vpop.permute.xlu0 %572
      %vm574 = vcmp.lt.s32.totalorder %v209, 127
      %v575 = vsel %vm574, %v571, %v573
      %v576 = vsel %vm574, %v573, %v571
      %s577 = scalar_lea.vmem %s2, 10
      %v578 = vld [vmem:[%s577] sm:$0x3]
      %v580 = vlaneseq
      %v581 = vshrl.u32 %v580, 7
      %v582 = vsub.s32 0, %v581
      %v583 = vrot.slane %v578, %v582
      %v584 = vlaneseq
      %v585 = vshrl.u32 %v584, 7
      %v586 = vsub.s32 1, %v585
      %v587 = vrot.slane %v578, %v586
      %v590 = vmul.f32 %v575, %v583
      %v591 = vmul.f32 %v576, %v587
      %v592 = vpack.c.bf16 %v590, %v590
      %v593 = vpack.c.bf16 %v591, %v591
      %s594 = scalar_lea.vmem %s1, 20
      %v595 = vld [vmem:[%s594] sm:$0xf]
      %v597 = vsel %vm256, %v595, 0
      %v600 = vsel %vm260, %v592, 0
      %v603 = vsel %vm260, %v593, 0
      %605 = vmatprep.subr.bf16.mxu0 0
      %606 = vmatpush1.bf16.msra.mxu0 0
      %607 = vmatprep.subr.bf16.mxu0 0
      %608 = vmatpush1.bf16.msra.mxu0 0
      %609 = vmatprep.subr.bf16.mxu0 0
      %610 = vmatpush1.bf16.msra.mxu0 0
      %611 = vmatprep.subr.bf16.mxu0 0
      %612 = vmatpush1.bf16.msra.mxu0 0
      %613 = vmatprep.subr.bf16.mxu0 0
      %614 = vmatpush1.bf16.msra.mxu0 0
      %615 = vmatprep.subr.bf16.mxu0 0
      %616 = vmatpush1.bf16.msra.mxu0 0
      %617 = vmatprep.subr.bf16.mxu0 0
      %618 = vmatpush1.bf16.msra.mxu0 0
      %619 = vmatprep.subr.bf16.mxu0 %v603
      %620 = vmatpush1.bf16.msra.mxu0 %v600
      %621 = vmatprep.subr.bf16.mxu0 0
      %622 = vmatpush2.bf16.msra.mxu0 0
      %623 = vmatprep.subr.bf16.mxu0 0
      %624 = vmatpush2.bf16.msra.mxu0 0
      %625 = vmatprep.subr.bf16.mxu0 0
      %626 = vmatpush2.bf16.msra.mxu0 0
      %627 = vmatprep.subr.bf16.mxu0 0
      %628 = vmatpush2.bf16.msra.mxu0 0
      %629 = vmatprep.subr.bf16.mxu0 0
      %630 = vmatpush2.bf16.msra.mxu0 0
      %631 = vmatprep.subr.bf16.mxu0 0
      %632 = vmatpush2.bf16.msra.mxu0 0
      %633 = vmatprep.subr.bf16.mxu0 0
      %634 = vmatpush2.bf16.msra.mxu0 0
      %635 = vmatprep.subr.bf16.mxu0 0
      %636 = vmatpush2.bf16.msra.mxu0 0
      %637 = vmatprep.mubr.bf16.mxu0 0
      %638 = vmatmul.mubr.bf16.gmra.mxu0 %v597
      %v639 = vpop.f32.mrf.mxu0
      %v640 = vadd.f32 0.0, %v639
      %v641 = vpop.f32.mrf.mxu0
      %v642 = vadd.f32 0.0, %v641
      %v643 = vpop.f32.mrf.mxu0
      %v644 = vpop.f32.mrf.mxu0
      %645 = vdwg.mxu0
      %v646 = vadd.f32 %v568, %v640
      %v647 = vadd.f32 %v569, %v642
      %648 = vrot.lane.b32.xlu0 %v200, 113
      %v649 = vpop.permute.xlu0 %648
      %650 = vrot.lane.b32.xlu0 %v202, 113
      %v651 = vpop.permute.xlu0 %650
      %vm652 = vcmp.lt.s32.totalorder %v209, 113
      %v653 = vsel %vm652, %v649, %v651
      %v654 = vsel %vm652, %v651, %v649
      %s655 = scalar_lea.vmem %s2, 12
      %v656 = vld [vmem:[%s655] sm:$0x3]
      %v658 = vlaneseq
      %v659 = vshrl.u32 %v658, 7
      %v660 = vsub.s32 0, %v659
      %v661 = vrot.slane %v656, %v660
      %v662 = vlaneseq
      %v663 = vshrl.u32 %v662, 7
      %v664 = vsub.s32 1, %v663
      %v665 = vrot.slane %v656, %v664
      %v668 = vmul.f32 %v653, %v661
      %v669 = vmul.f32 %v654, %v665
      %v670 = vpack.c.bf16 %v668, %v668
      %v671 = vpack.c.bf16 %v669, %v669
      %s672 = scalar_lea.vmem %s1, 24
      %v673 = vld [vmem:[%s672] sm:$0xf]
      %v675 = vsel %vm256, %v673, 0
      %v678 = vsel %vm260, %v670, 0
      %v681 = vsel %vm260, %v671, 0
      %683 = vmatprep.subr.bf16.mxu0 0
      %684 = vmatpush1.bf16.msra.mxu0 0
      %685 = vmatprep.subr.bf16.mxu0 0
      %686 = vmatpush1.bf16.msra.mxu0 0
      %687 = vmatprep.subr.bf16.mxu0 0
      %688 = vmatpush1.bf16.msra.mxu0 0
      %689 = vmatprep.subr.bf16.mxu0 0
      %690 = vmatpush1.bf16.msra.mxu0 0
      %691 = vmatprep.subr.bf16.mxu0 0
      %692 = vmatpush1.bf16.msra.mxu0 0
      %693 = vmatprep.subr.bf16.mxu0 0
      %694 = vmatpush1.bf16.msra.mxu0 0
      %695 = vmatprep.subr.bf16.mxu0 0
      %696 = vmatpush1.bf16.msra.mxu0 0
      %697 = vmatprep.subr.bf16.mxu0 %v681
      %698 = vmatpush1.bf16.msra.mxu0 %v678
      %699 = vmatprep.subr.bf16.mxu0 0
      %700 = vmatpush2.bf16.msra.mxu0 0
      %701 = vmatprep.subr.bf16.mxu0 0
      %702 = vmatpush2.bf16.msra.mxu0 0
      %703 = vmatprep.subr.bf16.mxu0 0
      %704 = vmatpush2.bf16.msra.mxu0 0
      %705 = vmatprep.subr.bf16.mxu0 0
      %706 = vmatpush2.bf16.msra.mxu0 0
      %707 = vmatprep.subr.bf16.mxu0 0
      %708 = vmatpush2.bf16.msra.mxu0 0
      %709 = vmatprep.subr.bf16.mxu0 0
      %710 = vmatpush2.bf16.msra.mxu0 0
      %711 = vmatprep.subr.bf16.mxu0 0
      %712 = vmatpush2.bf16.msra.mxu0 0
      %713 = vmatprep.subr.bf16.mxu0 0
      %714 = vmatpush2.bf16.msra.mxu0 0
      %715 = vmatprep.mubr.bf16.mxu0 0
      %716 = vmatmul.mubr.bf16.gmra.mxu0 %v675
      %v717 = vpop.f32.mrf.mxu0
      %v718 = vadd.f32 0.0, %v717
      %v719 = vpop.f32.mrf.mxu0
      %v720 = vadd.f32 0.0, %v719
      %v721 = vpop.f32.mrf.mxu0
      %v722 = vpop.f32.mrf.mxu0
      %723 = vdwg.mxu0
      %v724 = vadd.f32 %v646, %v718
      %v725 = vadd.f32 %v647, %v720
      %726 = vrot.lane.b32.xlu0 %v200, 112
      %v727 = vpop.permute.xlu0 %726
      %728 = vrot.lane.b32.xlu0 %v202, 112
      %v729 = vpop.permute.xlu0 %728
      %vm730 = vcmp.lt.s32.totalorder %v209, 112
      %v731 = vsel %vm730, %v727, %v729
      %v732 = vsel %vm730, %v729, %v727
      %s733 = scalar_lea.vmem %s2, 14
      %v734 = vld [vmem:[%s733] sm:$0x3]
      %v736 = vlaneseq
      %v737 = vshrl.u32 %v736, 7
      %v738 = vsub.s32 0, %v737
      %v739 = vrot.slane %v734, %v738
      %v740 = vlaneseq
      %v741 = vshrl.u32 %v740, 7
      %v742 = vsub.s32 1, %v741
      %v743 = vrot.slane %v734, %v742
      %v746 = vmul.f32 %v731, %v739
      %v747 = vmul.f32 %v732, %v743
      %v748 = vpack.c.bf16 %v746, %v746
      %v749 = vpack.c.bf16 %v747, %v747
      %s750 = scalar_lea.vmem %s1, 28
      %v751 = vld [vmem:[%s750] sm:$0xf]
      %v753 = vsel %vm256, %v751, 0
      %v756 = vsel %vm260, %v748, 0
      %v759 = vsel %vm260, %v749, 0
      %761 = vmatprep.subr.bf16.mxu0 0
      %762 = vmatpush1.bf16.msra.mxu0 0
      %763 = vmatprep.subr.bf16.mxu0 0
      %764 = vmatpush1.bf16.msra.mxu0 0
      %765 = vmatprep.subr.bf16.mxu0 0
      %766 = vmatpush1.bf16.msra.mxu0 0
      %767 = vmatprep.subr.bf16.mxu0 0
      %768 = vmatpush1.bf16.msra.mxu0 0
      %769 = vmatprep.subr.bf16.mxu0 0
      %770 = vmatpush1.bf16.msra.mxu0 0
      %771 = vmatprep.subr.bf16.mxu0 0
      %772 = vmatpush1.bf16.msra.mxu0 0
      %773 = vmatprep.subr.bf16.mxu0 0
      %774 = vmatpush1.bf16.msra.mxu0 0
      %775 = vmatprep.subr.bf16.mxu0 %v759
      %776 = vmatpush1.bf16.msra.mxu0 %v756
      %777 = vmatprep.subr.bf16.mxu0 0
      %778 = vmatpush2.bf16.msra.mxu0 0
      %779 = vmatprep.subr.bf16.mxu0 0
      %780 = vmatpush2.bf16.msra.mxu0 0
      %781 = vmatprep.subr.bf16.mxu0 0
      %782 = vmatpush2.bf16.msra.mxu0 0
      %783 = vmatprep.subr.bf16.mxu0 0
      %784 = vmatpush2.bf16.msra.mxu0 0
      %785 = vmatprep.subr.bf16.mxu0 0
      %786 = vmatpush2.bf16.msra.mxu0 0
      %787 = vmatprep.subr.bf16.mxu0 0
      %788 = vmatpush2.bf16.msra.mxu0 0
      %789 = vmatprep.subr.bf16.mxu0 0
      %790 = vmatpush2.bf16.msra.mxu0 0
      %791 = vmatprep.subr.bf16.mxu0 0
      %792 = vmatpush2.bf16.msra.mxu0 0
      %793 = vmatprep.mubr.bf16.mxu0 0
      %794 = vmatmul.mubr.bf16.gmra.mxu0 %v753
      %v795 = vpop.f32.mrf.mxu0
      %v796 = vadd.f32 0.0, %v795
      %v797 = vpop.f32.mrf.mxu0
      %v798 = vadd.f32 0.0, %v797
      %v799 = vpop.f32.mrf.mxu0
      %v800 = vpop.f32.mrf.mxu0
      %801 = vdwg.mxu0
      %v802 = vadd.f32 %v724, %v796
      %v803 = vadd.f32 %v725, %v798
      %804 = vrot.lane.b32.xlu0 %v200, 111
      %v805 = vpop.permute.xlu0 %804
      %806 = vrot.lane.b32.xlu0 %v202, 111
      %v807 = vpop.permute.xlu0 %806
      %vm808 = vcmp.lt.s32.totalorder %v209, 111
      %v809 = vsel %vm808, %v805, %v807
      %v810 = vsel %vm808, %v807, %v805
      %s811 = scalar_lea.vmem %s2, 16
      %v812 = vld [vmem:[%s811] sm:$0x3]
      %v814 = vlaneseq
      %v815 = vshrl.u32 %v814, 7
      %v816 = vsub.s32 0, %v815
      %v817 = vrot.slane %v812, %v816
      %v818 = vlaneseq
      %v819 = vshrl.u32 %v818, 7
      %v820 = vsub.s32 1, %v819
      %v821 = vrot.slane %v812, %v820
      %v824 = vmul.f32 %v809, %v817
      %v825 = vmul.f32 %v810, %v821
      %v826 = vpack.c.bf16 %v824, %v824
      %v827 = vpack.c.bf16 %v825, %v825
      %s828 = scalar_lea.vmem %s1, 32
      %v829 = vld [vmem:[%s828] sm:$0xf]
      %v831 = vsel %vm256, %v829, 0
      %v834 = vsel %vm260, %v826, 0
      %v837 = vsel %vm260, %v827, 0
      %839 = vmatprep.subr.bf16.mxu0 0
      %840 = vmatpush1.bf16.msra.mxu0 0
      %841 = vmatprep.subr.bf16.mxu0 0
      %842 = vmatpush1.bf16.msra.mxu0 0
      %843 = vmatprep.subr.bf16.mxu0 0
      %844 = vmatpush1.bf16.msra.mxu0 0
      %845 = vmatprep.subr.bf16.mxu0 0
      %846 = vmatpush1.bf16.msra.mxu0 0
      %847 = vmatprep.subr.bf16.mxu0 0
      %848 = vmatpush1.bf16.msra.mxu0 0
      %849 = vmatprep.subr.bf16.mxu0 0
      %850 = vmatpush1.bf16.msra.mxu0 0
      %851 = vmatprep.subr.bf16.mxu0 0
      %852 = vmatpush1.bf16.msra.mxu0 0
      %853 = vmatprep.subr.bf16.mxu0 %v837
      %854 = vmatpush1.bf16.msra.mxu0 %v834
      %855 = vmatprep.subr.bf16.mxu0 0
      %856 = vmatpush2.bf16.msra.mxu0 0
      %857 = vmatprep.subr.bf16.mxu0 0
      %858 = vmatpush2.bf16.msra.mxu0 0
      %859 = vmatprep.subr.bf16.mxu0 0
      %860 = vmatpush2.bf16.msra.mxu0 0
      %861 = vmatprep.subr.bf16.mxu0 0
      %862 = vmatpush2.bf16.msra.mxu0 0
      %863 = vmatprep.subr.bf16.mxu0 0
      %864 = vmatpush2.bf16.msra.mxu0 0
      %865 = vmatprep.subr.bf16.mxu0 0
      %866 = vmatpush2.bf16.msra.mxu0 0
      %867 = vmatprep.subr.bf16.mxu0 0
      %868 = vmatpush2.bf16.msra.mxu0 0
      %869 = vmatprep.subr.bf16.mxu0 0
      %870 = vmatpush2.bf16.msra.mxu0 0
      %871 = vmatprep.mubr.bf16.mxu0 0
      %872 = vmatmul.mubr.bf16.gmra.mxu0 %v831
      %v873 = vpop.f32.mrf.mxu0
      %v874 = vadd.f32 0.0, %v873
      %v875 = vpop.f32.mrf.mxu0
      %v876 = vadd.f32 0.0, %v875
      %v877 = vpop.f32.mrf.mxu0
      %v878 = vpop.f32.mrf.mxu0
      %879 = vdwg.mxu0
      %v880 = vadd.f32 %v802, %v874
      %v881 = vadd.f32 %v803, %v876
      %883 = vset.pattern.permute.xlu0 8
      %884 = vperm.xlu0 %883, %v199
      %v885 = vpop.permute.xlu0 %884
      %v887 = vadd.f32 %v880, %v885
      %v888 = vadd.f32 %v881, %v885
      %v889 = vadd.f32 %v887, %v888
      %890 = vadd.xlane.f32.xlu0 %v889
      %v891 = vpop.xlane.xlu0 %890
      %v892 = vmul.f32 %v887, %v887
      %v893 = vmul.f32 %v888, %v888
      %v894 = vadd.f32 %v892, %v893
      %895 = vadd.xlane.f32.xlu0 %v894
      %v896 = vpop.xlane.xlu0 %895
      %vm897 = vcmask 7168
      %v898 = vsel %vm897, %v891, %v896
      %vm899 = vcmask 64512
      %v900 = vsel %vm899, %v199, 0
      %902 = vmatprep.subr.mxu0 0.0
      %903 = vmatpush1.msra.mxu0 0.0
      %904 = vmatprep.subr.mxu0 0.0
      %905 = vmatpush1.msra.mxu0 0.0
      %906 = vmatprep.subr.mxu0 0.0
      %907 = vmatpush1.msra.mxu0 0.0
      %908 = vmatprep.subr.mxu0 0.0
      %909 = vmatpush1.msra.mxu0 0.0
      %910 = vmatprep.subr.mxu0 0.0
      %911 = vmatpush1.msra.mxu0 0.0
      %912 = vmatprep.subr.mxu0 0.0
      %913 = vmatpush1.msra.mxu0 0.0
      %914 = vmatprep.subr.mxu0 0.0
      %915 = vmatpush1.msra.mxu0 0.0
      %916 = vmatprep.subr.mxu0 0.0
      %917 = vmatpush1.msra.mxu0 0.0
      %918 = vmatprep.subr.mxu0 0.0
      %919 = vmatpush1.msra.mxu0 0.0
      %920 = vmatprep.subr.mxu0 0.0
      %921 = vmatpush1.msra.mxu0 0.0
      %922 = vmatprep.subr.mxu0 0.0
      %923 = vmatpush1.msra.mxu0 0.0
      %924 = vmatprep.subr.mxu0 0.0
      %925 = vmatpush1.msra.mxu0 0.0
      %926 = vmatprep.subr.mxu0 0.0
      %927 = vmatpush1.msra.mxu0 0.0
      %928 = vmatprep.subr.mxu0 0.0
      %929 = vmatpush1.msra.mxu0 0.0
      %930 = vmatprep.subr.mxu0 0.0
      %931 = vmatpush1.msra.mxu0 0.0
      %932 = vmatprep.subr.mxu0 0.0
      %933 = vmatpush1.msra.mxu0 %v898
      %934 = vmatprep.subr.mxu0 0.0
      %935 = vmatpush2.msra.mxu0 0.0
      %936 = vmatprep.subr.mxu0 0.0
      %937 = vmatpush2.msra.mxu0 0.0
      %938 = vmatprep.subr.mxu0 0.0
      %939 = vmatpush2.msra.mxu0 0.0
      %940 = vmatprep.subr.mxu0 0.0
      %941 = vmatpush2.msra.mxu0 0.0
      %942 = vmatprep.subr.mxu0 0.0
      %943 = vmatpush2.msra.mxu0 0.0
      %944 = vmatprep.subr.mxu0 0.0
      %945 = vmatpush2.msra.mxu0 0.0
      %946 = vmatprep.subr.mxu0 0.0
      %947 = vmatpush2.msra.mxu0 0.0
      %948 = vmatprep.subr.mxu0 0.0
      %949 = vmatpush2.msra.mxu0 0.0
      %950 = vmatprep.subr.mxu0 0.0
      %951 = vmatpush2.msra.mxu0 0.0
      %952 = vmatprep.subr.mxu0 0.0
      %953 = vmatpush2.msra.mxu0 0.0
      %954 = vmatprep.subr.mxu0 0.0
      %955 = vmatpush2.msra.mxu0 0.0
      %956 = vmatprep.subr.mxu0 0.0
      %957 = vmatpush2.msra.mxu0 0.0
      %958 = vmatprep.subr.mxu0 0.0
      %959 = vmatpush2.msra.mxu0 0.0
      %960 = vmatprep.subr.mxu0 0.0
      %961 = vmatpush2.msra.mxu0 0.0
      %962 = vmatprep.subr.mxu0 0.0
      %963 = vmatpush2.msra.mxu0 0.0
      %964 = vmatprep.subr.mxu0 0.0
      %965 = vmatpush2.msra.mxu0 0.0
      %966 = vmatprep.mubr.f32.mxu0 0.0
      %967 = vmatmul.mubr.f32.gmra.mxu0 %v900
      %v968 = vpop.f32.mrf.mxu0
      %v969 = vadd.f32 0.0, %v968
      %v970 = vpop.f32.mrf.mxu0
      %971 = vdwg.mxu0
      %v972 = vmul.f32 %v969, 0.0009765625
      %v973 = vmul.f32 %v972, %v972
      %975 = vrot.lane.b32.xlu0 %v973, 1
      %v976 = vpop.permute.xlu0 %975
      %v978 = vsub.f32 %v972, %v976
      %v979 = vmax.f32 %v978, 0.0
      %v980 = vadd.f32 %v979, 1e-05
      %v981 = vrsqrt.pop %v980
      %982 = vrot.lane.b32.xlu0 %v199, 120
      %v983 = vpop.permute.xlu0 %982
      %v985 = vmul.f32 %v981, %v983
      %987 = vrot.lane.b32.xlu0 %v985, 127
      %v988 = vpop.permute.xlu0 %987
      %v990 = vmul.f32 %v972, %v988
      %992 = vrot.lane.b32.xlu0 %v990, 10
      %v993 = vpop.permute.xlu0 %992
      %v995 = vsub.f32 %v199, %v993
      %996 = vset.pattern.permute.xlu0 1
      %997 = vperm.xlu0 %996, %v985
      %v998 = vpop.permute.xlu0 %997
      %v1000 = vmul.f32 %v887, %v998
      %v1001 = vmul.f32 %v888, %v998
      %1003 = vset.pattern.permute.xlu0 10
      %1004 = vperm.xlu0 %1003, %v995
      %v1005 = vpop.permute.xlu0 %1004
      %v1007 = vadd.f32 %v1000, %v1005
      %v1008 = vadd.f32 %v1001, %v1005
      %v1009 = vmax.f32 %v1007, 0.0
      %v1010 = vmax.f32 %v1008, 0.0
      %1011 = vst [vmem:[%s197] sm:$0xff] %v1009
      %1012 = vst [vmem:[%s197 + $0x8] sm:$0xff] %v1010
      %p1013 = scmp.lt.s32.totalorder %s15, 1
      %s1014 = scalar_select %p1013, %s15, 1
      %s1015 = smul.addr %s1014, 2
      %s1016 = smul.addr %s1015, 8
      %s1017 = scalar_lea.vmem %s4, %s1016
      // Predicated region
      $region37: #{encoder_conv_forward.1} parent=35 // pred_check
        %p1018 = pneg %p122
      $region38: #{encoder_conv_forward.1} parent=35 // pred_check_branch
        %1020 = sbr.rel (%p1018) target = $region40
      $region39: #{encoder_conv_forward.1} parent=35 // pred_region
        _
      $region40: #{encoder_conv_forward.1} parent=35 // pred_fallthru
        _
    $region36: #{encoder_conv_forward.1} parent=5 // pred_fallthru
      _
    %p1021 = scmp.le.s32.totalorder 2, %s10
    // Predicated region
    $region41: #{encoder_conv_forward.1} parent=5 // pred_check
      %p1022 = pneg %p1021
    $region42: #{encoder_conv_forward.1} parent=5 // pred_check_branch
      %1024 = sbr.rel (%p1022) target = $region44
    $region43: #{encoder_conv_forward.1} parent=5 // pred_region
      %s1025 = ssub.s32 %s10, 2
      // Predicated region
      $region45: #{encoder_conv_forward.1} parent=43 // pred_check
        %p1026 = pneg %p128
      $region46: #{encoder_conv_forward.1} parent=43 // pred_check_branch
        %1028 = sbr.rel (%p1026) target = $region48
      $region47: #{encoder_conv_forward.1} parent=43 // pred_region
        %p1029 = scmp.lt.s32.totalorder %s16, 1
        %s1030 = scalar_select %p1029, %s16, 1
        %s1031 = smul.addr %s1030, 2
        %s1032 = smul.addr %s1031, 8
        %s1033 = scalar_lea.vmem %s4, %s1032
      $region48: #{encoder_conv_forward.1} parent=43 // pred_fallthru
        _
    $region44: #{encoder_conv_forward.1} parent=5 // pred_fallthru
      _
  $region6: #{encoder_conv_forward.1} parent=0 // loop_footer
    %s14 = sadd.s32 1, %s10
  $region7: #{encoder_conv_forward.1} parent=0 // loop_footer_branch
    %9 = sbr.rel target = $region3
  $region8: #{encoder_conv_forward.1} parent=0 // loop_exit
    _

</llo_original>
